<compile_context>
chip_gen: v7x
topology: tpu7x:2x2x1
jax: 0.10.0
libtpu: 0.0.40
codegen_flags: <defaults>
</compile_context>

<pallas_src>
import jax
import jax.numpy as jnp
from jax.experimental import pallas as pl
from jax.experimental.pallas import tpu as pltpu


def _embed_kernel(ids_ref, wte_ref, wpe_ref, out_ref):
    """One grid step = all S tokens of one batch row.

    ids_ref: (1, S, 1) int32 VMEM  -- token ids for this batch row
    wte_ref: (V, D)          VMEM  -- full token-embedding table (DMA'd once, reused)
    wpe_ref: (S, D)          VMEM  -- position-embedding rows 0..S-1 (DMA'd once, reused)
    out_ref: (1, S, D)             -- dense (sublane=S, lane=D) output tile
    """
    S = out_ref.shape[1]
    V = wte_ref.shape[0]

    ids = ids_ref[0]                                              # (S, 1) int32
    vocab_iota = jax.lax.broadcasted_iota(jnp.int32, (S, V), 1)   # (S, V)
    one_hot = (ids == vocab_iota).astype(jnp.float32)             # (S, V)

    # Gather-as-matmul on the MXU: exact, since each output row is one wte row * 1.0.
    tok = jnp.dot(one_hot, wte_ref[...].astype(jnp.float32),
                  preferred_element_type=jnp.float32)             # (S, D)
    pos = wpe_ref[...].astype(jnp.float32)                        # (S, D)

    out_ref[0] = (tok + pos).astype(out_ref.dtype)


def gpt_embeddings(input_ids, wte, wpe):
    """input_ids: [B, S] int; wte: [V, D]; wpe: [P, D] -> [B, S, D] float32."""
    B, S = input_ids.shape
    V, D = wte.shape
    P, _ = wpe.shape

    if S > P:
        raise ValueError(
            f"sequence length {S} exceeds max_position_embeddings {P}")
    if S % 8 != 0 or D % 128 != 0:
        raise ValueError(
            f"kernel assumes S % 8 == 0 and D % 128 == 0 (got S={S}, D={D})")

    ids3 = input_ids.astype(jnp.int32).reshape(B, S, 1)

    grid_spec = pltpu.PrefetchScalarGridSpec(
        num_scalar_prefetch=0,
        grid=(B,),
        in_specs=[
            # token ids for batch row b; last dim 1 == full array dim -> valid tiling
            pl.BlockSpec((1, S, 1), lambda b: (b, 0, 0)),
            # full wte table; constant index_map -> DMA'd to VMEM once, reused
            pl.BlockSpec((V, D), lambda b: (0, 0)),
            # wpe rows 0..S-1; constant index_map -> DMA'd to VMEM once, reused
            pl.BlockSpec((S, D), lambda b: (0, 0)),
        ],
        out_specs=pl.BlockSpec((1, S, D), lambda b: (b, 0, 0)),
    )

    return pl.pallas_call(
        _embed_kernel,
        out_shape=jax.ShapeDtypeStruct((B, S, D), jnp.float32),
        grid_spec=grid_spec,
        compiler_params=pltpu.CompilerParams(
            dimension_semantics=("parallel",)),
    )(ids3, wte, wpe)


if __name__ == "__main__":
    # Small synthetic "config": vocab_size=64, max_position_embeddings=16,
    # hidden_size=128, batch=2, seq=8.
    vocab_size = 64
    max_position_embeddings = 16
    hidden_size = 128
    batch, seq = 2, 8

    key = jax.random.PRNGKey(0)
    k_wte, k_wpe, k_ids = jax.random.split(key, 3)

    # Deterministic parameter init (analogous to nn.Embedding's normal init).
    wte = 0.02 * jax.random.normal(k_wte, (vocab_size, hidden_size), dtype=jnp.float32)
    wpe = 0.02 * jax.random.normal(k_wpe, (max_position_embeddings, hidden_size),
                                   dtype=jnp.float32)

    input_ids = jax.random.randint(k_ids, (batch, seq), 0, vocab_size, dtype=jnp.int32)

    out = gpt_embeddings(input_ids, wte, wpe)
    out = jax.block_until_ready(out)

    # Pure-JAX reference check (same semantics as the PyTorch forward, eval mode).
    pos_ids = jnp.arange(seq, dtype=jnp.int32)
    ref = wte[input_ids] + wpe[pos_ids][None, :, :]
    assert out.shape == (batch, seq, hidden_size)
    assert out.dtype == jnp.float32
    assert jnp.allclose(out, ref, atol=1e-6), "mismatch vs reference"

    print("KERNEL_OK")
</pallas_src>

<mosaic_0001>
module attributes {stable_mosaic.version = 11 : i64} {
  func.func @_embed_kernel(%arg0: i32, %arg1: memref<1x8x1xi32, #tpu.memory_space<vmem>>, %arg2: memref<64x128xf32, #tpu.memory_space<vmem>>, %arg3: memref<8x128xf32, #tpu.memory_space<vmem>>, %arg4: memref<1x8x128xf32, #tpu.memory_space<vmem>>) attributes {dimension_semantics = [#tpu.dimension_semantics<parallel>], iteration_bounds = array<i64: 2>, scalar_prefetch = 0 : i64, scratch_operands = 0 : i64, tpu.core_type = #tpu.core_type<tc>, window_params = [{transform_indices = @transform_0, window_bounds = array<i64: 1, 8, 1>}, {pipeline_mode = #tpu.pipeline_mode<synchronous>, transform_indices = @transform_1, window_bounds = array<i64: 64, 128>}, {transform_indices = @transform_2, window_bounds = array<i64: 8, 128>}, {transform_indices = @transform_3, window_bounds = array<i64: 1, 8, 128>}]} {
    %c0 = arith.constant 0 : index
    %c0_0 = arith.constant 0 : index
    %c0_1 = arith.constant 0 : index
    %0 = vector.load %arg1[%c0, %c0_0, %c0_1] : memref<1x8x1xi32, #tpu.memory_space<vmem>>, vector<1x8x1xi32>
    %1 = vector.shape_cast %0 : vector<1x8x1xi32> to vector<8x1xi32>
    %2 = tpu.iota {dimensions = array<i32: 1>} : vector<8x64xi32>
    %3 = vector.broadcast %1 : vector<8x1xi32> to vector<8x64xi32>
    %4 = arith.cmpi eq, %3, %2 : vector<8x64xi32>
    %5 = arith.extui %4 : vector<8x64xi1> to vector<8x64xi32>
    %6 = arith.sitofp %5 : vector<8x64xi32> to vector<8x64xf32>
    %c0_2 = arith.constant 0 : index
    %c0_3 = arith.constant 0 : index
    %7 = vector.load %arg2[%c0_2, %c0_3] : memref<64x128xf32, #tpu.memory_space<vmem>>, vector<64x128xf32>
    %cst = arith.constant dense<0.000000e+00> : vector<8x128xf32>
    %8 = tpu.matmul %6, %7, %cst {dimension_numbers = #tpu.dot_dimension_numbers<[1], [0], [0], [1], [0, 0, 1, 1], [], []>} : vector<8x64xf32>, vector<64x128xf32>, vector<8x128xf32> -> vector<8x128xf32>
    %c0_4 = arith.constant 0 : index
    %c0_5 = arith.constant 0 : index
    %9 = vector.load %arg3[%c0_4, %c0_5] : memref<8x128xf32, #tpu.memory_space<vmem>>, vector<8x128xf32>
    %10 = arith.addf %8, %9 : vector<8x128xf32>
    %c0_6 = arith.constant 0 : index
    %c0_7 = arith.constant 0 : index
    %c0_8 = arith.constant 0 : index
    %11 = vector.load %arg4[%c0_6, %c0_7, %c0_8] : memref<1x8x128xf32, #tpu.memory_space<vmem>>, vector<1x8x128xf32>
    %12 = vector.shape_cast %11 : vector<1x8x128xf32> to vector<8x128xf32>
    %13 = vector.shape_cast %10 : vector<8x128xf32> to vector<1x8x128xf32>
    tpu.vector_store %arg4[%c0_6, %c0_7, %c0_8], %13 {strides = array<i32>} : memref<1x8x128xf32, #tpu.memory_space<vmem>>, vector<1x8x128xf32>,
    return
  }
  func.func @transform_0(%arg0: i32) -> (i32, i32, i32) {
    %c0_i32 = arith.constant 0 : i32
    %c0_i32_0 = arith.constant 0 : i32
    %c0_i32_1 = arith.constant 0 : i32
    return %arg0, %c0_i32, %c0_i32_0 : i32, i32, i32
  }
  func.func @transform_1(%arg0: i32) -> (i32, i32) {
    %c0_i32 = arith.constant 0 : i32
    %c0_i32_0 = arith.constant 0 : i32
    %c0_i32_1 = arith.constant 0 : i32
    return %c0_i32, %c0_i32_0 : i32, i32
  }
  func.func @transform_2(%arg0: i32) -> (i32, i32) {
    %c0_i32 = arith.constant 0 : i32
    %c0_i32_0 = arith.constant 0 : i32
    %c0_i32_1 = arith.constant 0 : i32
    return %c0_i32, %c0_i32_0 : i32, i32
  }
  func.func @transform_3(%arg0: i32) -> (i32, i32, i32) {
    %c0_i32 = arith.constant 0 : i32
    %c0_i32_0 = arith.constant 0 : i32
    %c0_i32_1 = arith.constant 0 : i32
    return %arg0, %c0_i32, %c0_i32_0 : i32, i32, i32
  }
}

</mosaic_0001>

<llo_original>
// kernel: tpu_custom_call.1
$region0: #{tpu_custom_call.1}
  #allocation0 [shape = 'u32[]', space=smem, size = 0x4, offset = 0x4, fixed_abs, tag = 'smem constant byte address 0x4 - core index']
  #allocation1 [shape = 'u32[144,128]{1,0:T(1,128)}', space=vmem, size = 0x12000, scoped, tag = 'internal scratch']
  %s0 = inlined_call_operand.vmem [shape: s32[2,8,1], index: 0, kind: input, shape index: {}]
  %s1 = inlined_call_operand.hbm [shape: f32[64,128], index: 1, kind: input, shape index: {}]
  %s2 = inlined_call_operand.vmem [shape: f32[16,128], index: 2, kind: input, shape index: {}]
  %s3 = inlined_call_operand.hbm [shape: f32[2,8,128], index: 3, kind: output, shape index: {}]
  %s4 = sld [smem:[#allocation0]]
  $region49: #{tpu_custom_call.1} parent=0
    _
  %s6 = ssub.s32 1, %s4
  %s7 = scalar_select 0, %s6, %s4
  $region1: #{tpu_custom_call.1} parent=0
    #allocation2 [shape = 'u8[32768]{0}', space=vmem, size = 0x8000, scoped, tag = 'input window, operand 1, single buffered']
    #allocation3 [shape = 's32[2]{0}', space=sflag, size = 0x8, scoped, tag = 'scoped memory for tpu_custom_call.1']
    #allocation4 [shape = 's32[2]{0}', space=sflag, size = 0x8, scoped, tag = 'scoped memory for tpu_custom_call.1']
    #allocation5 [shape = 'u8[8192]{0}', space=vmem, size = 0x2000, scoped, tag = 'output window, operand 0']
    %8 = vsyncpa [#allocation3], 0
    %9 = vsyncpa [#allocation4], 0
    %s10 = scalar_lea.sflag [#allocation4], 1
    %11 = vsyncpa %s10, 0
    loop: start=0, step=1, limit=4
    $region2: #{tpu_custom_call.1} parent=1 // loop_pre_header
      _
    $region3: #{tpu_custom_call.1} parent=1 // loop_header
      %s13 = sphi 0, %s17
      %p14 = scmp.ge.s32.totalorder %s13, 4
      %s23 = sphi 0, %s25
      %s26 = sphi 0, %s23
      %s27 = sphi 0, %s26
      %s43 = sphi 0, %s27
      %s47 = sphi 0, %s47
      %s49 = sphi 0, %s47
      %s50 = sphi 0, %s49
      %s64 = sphi 0, %s50
      %s68 = sphi 0, %s68
      %s70 = sphi 0, %s68
      %s71 = sphi 0, %s70
      %s85 = sphi 0, %s71
      %s91 = sphi 0, %s93
      %s94 = sphi 0, %s91
      %s95 = sphi 0, %s94
      %s111 = sphi 0, %s95
    $region4: #{tpu_custom_call.1} parent=1 // loop_header_branch
      %16 = sbr.rel (%p14) target = $region8
    $region5: #{tpu_custom_call.1} parent=1 // loop_body
      %s18 = ssub.s32 %s13, 1
      %s19 = ssub.s32 %s13, 2
      %s20 = sadd.s32 %s13, 1
      %s21 = ssub.s32 %s13, %s20
      %p22 = scmp.eq.s32.totalorder %s21, 0
      %s24 = sadd.s32 %s23, 1
      %s25 = scalar_select %p22, %s23, %s24
      %p28 = pneg %p22
      %p29 = scmp.eq.s32.totalorder %s13, 1
      %p30 = por %p28, %p29
      %p31 = scmp.ne.s32.totalorder %s23, %s26
      %p32 = scmp.eq.s32.totalorder %s13, 0
      %p33 = por %p31, %p32
      %p34 = scmp.ne.s32.totalorder %s23, %s26
      %p35 = scmp.eq.s32.totalorder %s18, 1
      %p36 = por %p34, %p35
      %p37 = scmp.ne.s32.totalorder %s26, %s27
      %p38 = scmp.eq.s32.totalorder %s18, 0
      %p39 = por %p37, %p38
      %p40 = scmp.ne.s32.totalorder %s26, %s27
      %p41 = scmp.eq.s32.totalorder %s19, 1
      %p42 = por %p40, %p41
      %p44 = scmp.ne.s32.totalorder %s27, %s43
      %p45 = scmp.eq.s32.totalorder %s19, 0
      %p46 = por %p44, %p45
      %s48 = sadd.s32 %s47, 1
      %p51 = scmp.eq.s32.totalorder %s13, 1
      %p52 = scmp.ne.s32.totalorder %s47, %s49
      %p53 = scmp.eq.s32.totalorder %s13, 0
      %p54 = por %p52, %p53
      %p55 = scmp.ne.s32.totalorder %s47, %s49
      %p56 = scmp.eq.s32.totalorder %s18, 1
      %p57 = por %p55, %p56
      %p58 = scmp.ne.s32.totalorder %s49, %s50
      %p59 = scmp.eq.s32.totalorder %s18, 0
      %p60 = por %p58, %p59
      %p61 = scmp.ne.s32.totalorder %s49, %s50
      %p62 = scmp.eq.s32.totalorder %s19, 1
      %p63 = por %p61, %p62
      %p65 = scmp.ne.s32.totalorder %s50, %s64
      %p66 = scmp.eq.s32.totalorder %s19, 0
      %p67 = por %p65, %p66
      %s69 = sadd.s32 %s68, 1
      %p72 = scmp.eq.s32.totalorder %s13, 1
      %p73 = scmp.ne.s32.totalorder %s68, %s70
      %p74 = scmp.eq.s32.totalorder %s13, 0
      %p75 = por %p73, %p74
      %p76 = scmp.ne.s32.totalorder %s68, %s70
      %p77 = scmp.eq.s32.totalorder %s18, 1
      %p78 = por %p76, %p77
      %p79 = scmp.ne.s32.totalorder %s70, %s71
      %p80 = scmp.eq.s32.totalorder %s18, 0
      %p81 = por %p79, %p80
      %p82 = scmp.ne.s32.totalorder %s70, %s71
      %p83 = scmp.eq.s32.totalorder %s19, 1
      %p84 = por %p82, %p83
      %p86 = scmp.ne.s32.totalorder %s71, %s85
      %p87 = scmp.eq.s32.totalorder %s19, 0
      %p88 = por %p86, %p87
      %s89 = ssub.s32 %s13, %s20
      %p90 = scmp.eq.s32.totalorder %s89, 0
      %s92 = sadd.s32 %s91, 1
      %s93 = scalar_select %p90, %s91, %s92
      %p96 = pneg %p90
      %p97 = scmp.eq.s32.totalorder %s13, 1
      %p98 = por %p96, %p97
      %p99 = scmp.ne.s32.totalorder %s91, %s94
      %p100 = scmp.eq.s32.totalorder %s13, 0
      %p101 = por %p99, %p100
      %p102 = scmp.ne.s32.totalorder %s91, %s94
      %p103 = scmp.eq.s32.totalorder %s18, 1
      %p104 = por %p102, %p103
      %p105 = scmp.ne.s32.totalorder %s94, %s95
      %p106 = scmp.eq.s32.totalorder %s18, 0
      %p107 = por %p105, %p106
      %p108 = scmp.ne.s32.totalorder %s94, %s95
      %p109 = scmp.eq.s32.totalorder %s19, 1
      %p110 = por %p108, %p109
      %p112 = scmp.ne.s32.totalorder %s95, %s111
      %p113 = scmp.eq.s32.totalorder %s19, 0
      %p114 = por %p112, %p113
      %p115 = scmp.le.s32.totalorder 1, %s13
      %p116 = scmp.lt.s32.totalorder %s13, 3
      %p117 = pnand %p115, %p116
      %p118 = pneg %p117
      // Predicated region
      $region9: #{tpu_custom_call.1} parent=5 // pred_check
        _
      $region10: #{tpu_custom_call.1} parent=5 // pred_check_branch
        %120 = sbr.rel (%p117) target = $region12
      $region11: #{tpu_custom_call.1} parent=5 // pred_region
        %s121 = ssub.s32 %s13, 1
        // Predicated region
        $region13: #{tpu_custom_call.1} parent=11 // pred_check
          %p122 = pneg %p60
        $region14: #{tpu_custom_call.1} parent=11 // pred_check_branch
          %124 = sbr.rel (%p122) target = $region16
        $region15: #{tpu_custom_call.1} parent=11 // pred_region
          %s126 = ssub.s32 1024, 1024
          %127 = vsyncadd [#allocation3], %s126
          %s128 = sshll.u32 [#allocation2], 4
          %s129 = int_to_ptr.vmem [resolvable:$true] %s128
          %134 = dma.hbm_to_vmem [thread:$0]  %s1, 1024, %s129, [#allocation3], 128, 128, 8
        $region16: #{tpu_custom_call.1} parent=11 // pred_fallthru
          _
        // Predicated region
        $region17: #{tpu_custom_call.1} parent=11 // pred_check
          %p135 = pneg %p81
        $region18: #{tpu_custom_call.1} parent=11 // pred_check_branch
          %137 = sbr.rel (%p135) target = $region20
        $region19: #{tpu_custom_call.1} parent=11 // pred_region
          _
        $region20: #{tpu_custom_call.1} parent=11 // pred_fallthru
          _
      $region12: #{tpu_custom_call.1} parent=5 // pred_fallthru
        _
      %p138 = scmp.lt.s32.totalorder %s13, 2
      // Predicated region
      $region21: #{tpu_custom_call.1} parent=5 // pred_check
        %p139 = pneg %p138
      $region22: #{tpu_custom_call.1} parent=5 // pred_check_branch
        %141 = sbr.rel (%p139) target = $region24
      $region23: #{tpu_custom_call.1} parent=5 // pred_region
        // Predicated region
        $region25: #{tpu_custom_call.1} parent=23 // pred_check
          %p142 = pneg %p33
        $region26: #{tpu_custom_call.1} parent=23 // pred_check_branch
          %144 = sbr.rel (%p142) target = $region28
        $region27: #{tpu_custom_call.1} parent=23 // pred_region
          %p145 = scmp.lt.s32.totalorder %s13, 1
          %s146 = scalar_select %p145, %s13, 1
          %s147 = smul.addr %s146, 8
          %s148 = scalar_lea.vmem %s0, %s147
        $region28: #{tpu_custom_call.1} parent=23 // pred_fallthru
          _
      $region24: #{tpu_custom_call.1} parent=5 // pred_fallthru
        _
      %p149 = scmp.le.s32.totalorder 1, %s13
      %p150 = scmp.lt.s32.totalorder %s13, 3
      %p151 = pnand %p149, %p150
      %p152 = pneg %p151
      // Predicated region
      $region29: #{tpu_custom_call.1} parent=5 // pred_check
        _
      $region30: #{tpu_custom_call.1} parent=5 // pred_check_branch
        %154 = sbr.rel (%p151) target = $region32
      $region31: #{tpu_custom_call.1} parent=5 // pred_region
        %s155 = ssub.s32 %s13, 1
        // Predicated region
        $region33: #{tpu_custom_call.1} parent=31 // pred_check
          %p156 = pneg %p60
        $region34: #{tpu_custom_call.1} parent=31 // pred_check_branch
          %158 = sbr.rel (%p156) target = $region36
        $region35: #{tpu_custom_call.1} parent=31 // pred_region
          %159 = dma.done [#allocation3], 1024
        $region36: #{tpu_custom_call.1} parent=31 // pred_fallthru
          _
        %p160 = scmp.lt.s32.totalorder %s18, 1
        %s161 = scalar_select %p160, %s18, 1
        %s162 = smul.addr %s161, 8
        %s163 = scalar_lea.vmem %s0, %s162
        %p164 = pneg %p39
        %p165 = pneg %p36
        %p166 = pneg %p60
        %p167 = pneg %p57
        %p168 = pneg %p81
        %p169 = pneg %p78
        %p170 = pneg %p107
        %p171 = pneg %p104
        %s172 = sand.u32 %s94, 1
        %s173 = scalar_lea.sflag [#allocation4], %s172
        %s174 = sand.u32 %s94, 1
        %s175 = smul.addr %s174, 8
        %s176 = scalar_lea.vmem [#allocation5], %s175
        %p177 = scmp.lt.s32.totalorder %s18, 1
        %s178 = scalar_select %p177, %s18, 1
        %s179 = smul.addr %s178, 8
        %s180 = scalar_lea.vmem %s0, %s179
        %v181 = vld [vmem:[%s180] sm:$0xff]
        %v182 = vlaneseq
        %v183 = vand.u32 %v182, 127
        %184 = vset.pattern.permute.xlu0 0
        %185 = vperm.xlu0 %184, %v181
        %v186 = vpop.permute.xlu0 %185
        %vm187 = vcmp.eq.s32.totalorder %v186, %v183
        %v188 = vsel %vm187, 1, 0
        %v189 = vcvt.s32.f32 %v188
        %v190 = vld [vmem:[#allocation2] sm:$0xff]
        %v191 = vld [vmem:[#allocation2 + $0x8] sm:$0xff]
        %v192 = vld [vmem:[#allocation2 + $0x10] sm:$0xff]
        %v193 = vld [vmem:[#allocation2 + $0x18] sm:$0xff]
        %v194 = vld [vmem:[#allocation2 + $0x20] sm:$0xff]
        %v195 = vld [vmem:[#allocation2 + $0x28] sm:$0xff]
        %v196 = vld [vmem:[#allocation2 + $0x30] sm:$0xff]
        %v197 = vld [vmem:[#allocation2 + $0x38] sm:$0xff]
        %v198 = vld [vmem:[%s2] sm:$0xff]
        %vm199 = vcmask 523264
        %v201 = vsel %vm199, %v189, 0
        %203 = vmatprep.subr.mxu0 0.0
        %204 = vmatpush1.msra.mxu0 %v190
        %205 = vmatprep.subr.mxu0 0.0
        %206 = vmatpush1.msra.mxu0 %v191
        %207 = vmatprep.subr.mxu0 0.0
        %208 = vmatpush1.msra.mxu0 %v192
        %209 = vmatprep.subr.mxu0 0.0
        %210 = vmatpush1.msra.mxu0 %v193
        %211 = vmatprep.subr.mxu0 0.0
        %212 = vmatpush1.msra.mxu0 %v194
        %213 = vmatprep.subr.mxu0 0.0
        %214 = vmatpush1.msra.mxu0 %v195
        %215 = vmatprep.subr.mxu0 0.0
        %216 = vmatpush1.msra.mxu0 %v196
        %217 = vmatprep.subr.mxu0 0.0
        %218 = vmatpush1.msra.mxu0 %v197
        %219 = vmatprep.subr.mxu0 0.0
        %220 = vmatpush1.msra.mxu0 0.0
        %221 = vmatprep.subr.mxu0 0.0
        %222 = vmatpush1.msra.mxu0 0.0
        %223 = vmatprep.subr.mxu0 0.0
        %224 = vmatpush1.msra.mxu0 0.0
        %225 = vmatprep.subr.mxu0 0.0
        %226 = vmatpush1.msra.mxu0 0.0
        %227 = vmatprep.subr.mxu0 0.0
        %228 = vmatpush1.msra.mxu0 0.0
        %229 = vmatprep.subr.mxu0 0.0
        %230 = vmatpush1.msra.mxu0 0.0
        %231 = vmatprep.subr.mxu0 0.0
        %232 = vmatpush1.msra.mxu0 0.0
        %233 = vmatprep.subr.mxu0 0.0
        %234 = vmatpush1.msra.mxu0 0.0
        %235 = vmatprep.subr.mxu0 0.0
        %236 = vmatpush1.msra.mxu0 0.0
        %237 = vmatprep.subr.mxu0 0.0
        %238 = vmatpush1.msra.mxu0 0.0
        %239 = vmatprep.subr.mxu0 0.0
        %240 = vmatpush1.msra.mxu0 0.0
        %241 = vmatprep.subr.mxu0 0.0
        %242 = vmatpush1.msra.mxu0 0.0
        %243 = vmatprep.subr.mxu0 0.0
        %244 = vmatpush1.msra.mxu0 0.0
        %245 = vmatprep.subr.mxu0 0.0
        %246 = vmatpush1.msra.mxu0 0.0
        %247 = vmatprep.subr.mxu0 0.0
        %248 = vmatpush1.msra.mxu0 0.0
        %249 = vmatprep.subr.mxu0 0.0
        %250 = vmatpush1.msra.mxu0 0.0
        %251 = vmatprep.subr.mxu0 0.0
        %252 = vmatpush1.msra.mxu0 0.0
        %253 = vmatprep.subr.mxu0 0.0
        %254 = vmatpush1.msra.mxu0 0.0
        %255 = vmatprep.subr.mxu0 0.0
        %256 = vmatpush1.msra.mxu0 0.0
        %257 = vmatprep.subr.mxu0 0.0
        %258 = vmatpush1.msra.mxu0 0.0
        %259 = vmatprep.subr.mxu0 0.0
        %260 = vmatpush1.msra.mxu0 0.0
        %261 = vmatprep.subr.mxu0 0.0
        %262 = vmatpush1.msra.mxu0 0.0
        %263 = vmatprep.subr.mxu0 0.0
        %264 = vmatpush1.msra.mxu0 0.0
        %265 = vmatprep.subr.mxu0 0.0
        %266 = vmatpush1.msra.mxu0 0.0
        %267 = vmatprep.mubr.f32.mxu0 0.0
        %268 = vmatmul.mubr.f32.gmra.mrb[0].mxu0 %v201
        %v269 = vpop.f32.mrb[0].mxu0
        %v270 = vadd.f32 %v198, %v269
        %v271 = vpop.f32.mrb[0].mxu0
        %272 = vdwg.mxu0
        %273 = vst [vmem:[%s176] sm:$0xff] %v270
        %s274 = sand.u32 %s94, 1
        %s275 = scalar_lea.sflag [#allocation4], %s274
        %s276 = sand.u32 %s94, 1
        %s277 = smul.addr %s276, 8
        %s278 = scalar_lea.vmem [#allocation5], %s277
        // Predicated region
        $region37: #{tpu_custom_call.1} parent=31 // pred_check
          %p279 = pneg %p104
        $region38: #{tpu_custom_call.1} parent=31 // pred_check_branch
          %281 = sbr.rel (%p279) target = $region40
        $region39: #{tpu_custom_call.1} parent=31 // pred_region
          %s283 = ssub.s32 128, 128
          %284 = vsyncadd %s275, %s283
          %s285 = smul.addr %s18, 128
          %s286 = scalar_lea.hbm %s3, %s285
          %s288 = sshll.u32 %s278, 4
          %s289 = int_to_ptr.vmem [resolvable:$true] %s288
          %291 = dma.vmem_to_hbm [thread:$0]  %s289, 128, %s286, %s275
        $region40: #{tpu_custom_call.1} parent=31 // pred_fallthru
          _
      $region32: #{tpu_custom_call.1} parent=5 // pred_fallthru
        _
      %p292 = scmp.le.s32.totalorder 2, %s13
      // Predicated region
      $region41: #{tpu_custom_call.1} parent=5 // pred_check
        %p293 = pneg %p292
      $region42: #{tpu_custom_call.1} parent=5 // pred_check_branch
        %295 = sbr.rel (%p293) target = $region44
      $region43: #{tpu_custom_call.1} parent=5 // pred_region
        %s296 = ssub.s32 %s13, 2
        // Predicated region
        $region45: #{tpu_custom_call.1} parent=43 // pred_check
          %p297 = pneg %p110
        $region46: #{tpu_custom_call.1} parent=43 // pred_check_branch
          %299 = sbr.rel (%p297) target = $region48
        $region47: #{tpu_custom_call.1} parent=43 // pred_region
          %s300 = sand.u32 %s95, 1
          %s301 = scalar_lea.sflag [#allocation4], %s300
          %s302 = sand.u32 %s95, 1
          %s303 = smul.addr %s302, 8
          %s304 = scalar_lea.vmem [#allocation5], %s303
          %305 = dma.done %s301, 128
        $region48: #{tpu_custom_call.1} parent=43 // pred_fallthru
          _
      $region44: #{tpu_custom_call.1} parent=5 // pred_fallthru
        _
    $region6: #{tpu_custom_call.1} parent=1 // loop_footer
      %s17 = sadd.s32 1, %s13
    $region7: #{tpu_custom_call.1} parent=1 // loop_footer_branch
      %12 = sbr.rel target = $region3
    $region8: #{tpu_custom_call.1} parent=1 // loop_exit
      _
    %306 = vsyncpa [#allocation3], 1
    %s307 = scalar_lea.sflag [#allocation3], 1
    %308 = vsyncpa %s307, 1
    %309 = vsyncpa [#allocation4], 1
    %s310 = scalar_lea.sflag [#allocation4], 1
    %311 = vsyncpa %s310, 1

</llo_original>
